<compile_context>
chip_gen: v7x
topology: tpu7x:2x2x1
jax: 0.10.0
libtpu: 0.0.40
codegen_flags: <defaults>
</compile_context>

<pallas_src>
import jax
import jax.numpy as jnp
from jax.experimental import pallas as pl
from jax.experimental.pallas import tpu as pltpu


def _round_up(x, m):
    return (x + m - 1) // m * m


def masklm_mlp_kernel(x_ref, w1_ref, b1_ref, g_ref, beta_ref, w2_ref, b2_ref,
                      o_ref, h_scratch):
    """Produces one (tile_m, tile_n) tile of the logits.

    Grid = (num_m_tiles, num_vocab_tiles).  The H->H MLP + LayerNorm is only
    evaluated at the first vocab tile of each M-tile and cached in VMEM.
    """
    j = pl.program_id(1)

    @pl.when(j == 0)
    def _():
        # Linear 1 (H -> H): bf16 operands, f32 accumulation on the MXU.
        h = jnp.dot(x_ref[...], w1_ref[...],
                    preferred_element_type=jnp.float32) + b1_ref[...]
        h = jnp.maximum(h, 0.0)
        # LayerNorm over last dim in f32 (population variance, eps = 1e-5,
        # matches nn.LayerNorm).
        mean = jnp.mean(h, axis=-1, keepdims=True)
        var = jnp.mean((h - mean) * (h - mean), axis=-1, keepdims=True)
        h = (h - mean) * jax.lax.rsqrt(var + 1e-5)
        h = h * g_ref[...] + beta_ref[...]
        h_scratch[...] = h.astype(h_scratch.dtype)

    # Linear 2 (H -> tile_n slice of V), reusing the cached activations.
    out = jnp.dot(h_scratch[...], w2_ref[...],
                  preferred_element_type=jnp.float32) + b2_ref[...]
    o_ref[...] = out.astype(o_ref.dtype)


def masklm_forward(X, pred_positions, params, *,
                   tile_m_max=256, tile_n_max=512,
                   compute_dtype=jnp.bfloat16):
    """X: (B, S, H); pred_positions: (B, P) int32 -> logits (B, P, V)."""
    B, S, H = X.shape
    P = pred_positions.shape[1]
    w1, b1, gamma, beta, w2, b2 = params
    V = w2.shape[1]

    # --- gather masked positions (plain-JAX glue, matches torch indexing) ---
    batch_idx = jnp.repeat(jnp.arange(B), P)            # (B*P,)
    pos_flat = pred_positions.reshape(-1)               # (B*P,)
    masked_X = X[batch_idx, pos_flat]                   # (B*P, H)

    M = B * P

    # Tile sizes: M tiles are multiples of 16 (bf16 sublane packing),
    # vocab tiles are multiples of 128 (lane-dense stores), both clipped to the
    # (padded) problem size so tiny demo shapes still work.
    tile_m = min(tile_m_max, _round_up(M, 16))
    tile_n = min(tile_n_max, _round_up(V, 128))
    M_pad = _round_up(M, tile_m)
    V_pad = _round_up(V, tile_n)

    # Pad + cast matmul operands to the MXU compute dtype.  Biases / LayerNorm
    # params stay f32 (they are applied to the f32 accumulator).
    x_p = jnp.zeros((M_pad, H), compute_dtype).at[:M].set(
        masked_X.astype(compute_dtype))
    w1_c = w1.astype(compute_dtype)
    w2_p = jnp.zeros((H, V_pad), compute_dtype).at[:, :V].set(
        w2.astype(compute_dtype))
    b2_p = jnp.zeros((1, V_pad), jnp.float32).at[:, :V].set(
        b2.astype(jnp.float32))

    grid = (M_pad // tile_m, V_pad // tile_n)

    itemsize = jnp.dtype(compute_dtype).itemsize
    flops = 2 * M_pad * H * H + 2 * M_pad * H * V_pad
    bytes_accessed = (M_pad * H * itemsize                 # x tiles
                      + H * H * itemsize                   # W1
                      + grid[0] * H * V_pad * itemsize     # W2 streamed per M-tile
                      + M_pad * V_pad * 4)                 # logits writeback

    out_flat = pl.pallas_call(
        masklm_mlp_kernel,
        out_shape=jax.ShapeDtypeStruct((M_pad, V_pad), X.dtype),
        grid_spec=pltpu.PrefetchScalarGridSpec(
            num_scalar_prefetch=0,
            grid=grid,
            in_specs=[
                pl.BlockSpec((tile_m, H), lambda i, j: (i, 0)),   # x tile
                pl.BlockSpec((H, H), lambda i, j: (0, 0)),        # W1
                pl.BlockSpec((1, H), lambda i, j: (0, 0)),        # b1
                pl.BlockSpec((1, H), lambda i, j: (0, 0)),        # gamma
                pl.BlockSpec((1, H), lambda i, j: (0, 0)),        # beta
                pl.BlockSpec((H, tile_n), lambda i, j: (0, j)),   # W2 vocab tile
                pl.BlockSpec((1, tile_n), lambda i, j: (0, j)),   # b2 vocab tile
            ],
            out_specs=pl.BlockSpec((tile_m, tile_n), lambda i, j: (i, j)),
            scratch_shapes=[pltpu.VMEM((tile_m, H), compute_dtype)],
        ),
        compiler_params=pltpu.CompilerParams(
            dimension_semantics=("parallel", "arbitrary"),
        ),
        cost_estimate=pl.CostEstimate(
            flops=flops, transcendentals=M_pad, bytes_accessed=bytes_accessed),
    )(x_p, w1_c,
      b1.reshape(1, H).astype(jnp.float32),
      gamma.reshape(1, H).astype(jnp.float32),
      beta.reshape(1, H).astype(jnp.float32),
      w2_p, b2_p)

    # Slice off M / V padding and restore (B, P, V).
    return out_flat[:M, :V].reshape(B, P, V)


def reference_forward(X, pred_positions, params):
    """Pure-JAX (f32) reference mirroring the PyTorch module."""
    w1, b1, gamma, beta, w2, b2 = params
    B = X.shape[0]
    P = pred_positions.shape[1]
    batch_idx = jnp.repeat(jnp.arange(B), P)
    masked_X = X[batch_idx, pred_positions.reshape(-1)].reshape(B, P, -1)
    h = jnp.maximum(masked_X @ w1 + b1, 0.0)
    mean = jnp.mean(h, axis=-1, keepdims=True)
    var = jnp.mean((h - mean) ** 2, axis=-1, keepdims=True)
    h = (h - mean) / jnp.sqrt(var + 1e-5) * gamma + beta
    return h @ w2 + b2


if __name__ == "__main__":
    # Small shapes consistent with the forward pass.
    B, S, H, V, P = 2, 8, 32, 64, 4

    key = jax.random.PRNGKey(0)
    k_x, k_pos, k_w1, k_b1, k_w2, k_b2 = jax.random.split(key, 6)

    X = jax.random.normal(k_x, (B, S, H), dtype=jnp.float32)
    pred_positions = jax.random.randint(k_pos, (B, P), 0, S, dtype=jnp.int32)

    # Deterministic parameter init (shapes from nn.LazyLinear / nn.LayerNorm).
    w1 = jax.random.normal(k_w1, (H, H), dtype=jnp.float32) * 0.02
    b1 = jax.random.normal(k_b1, (H,), dtype=jnp.float32) * 0.02
    gamma = jnp.ones((H,), dtype=jnp.float32)
    beta = jnp.zeros((H,), dtype=jnp.float32)
    w2 = jax.random.normal(k_w2, (H, V), dtype=jnp.float32) * 0.02
    b2 = jax.random.normal(k_b2, (V,), dtype=jnp.float32) * 0.02
    params = (w1, b1, gamma, beta, w2, b2)

    out = masklm_forward(X, pred_positions, params)
    out = jax.block_until_ready(out)

    ref = reference_forward(X, pred_positions, params)
    assert out.shape == (B, P, V)
    # Tolerance loosened vs the pure-f32 kernel because the matmul operands run
    # in bf16 (accumulation and LayerNorm stay f32).
    assert jnp.allclose(out, ref, atol=2e-2, rtol=2e-2), "mismatch vs reference"

    print("KERNEL_OK")
</pallas_src>

<mosaic_0001>
module attributes {stable_mosaic.version = 11 : i64} {
  func.func @masklm_mlp_kernel(%arg0: i32, %arg1: i32, %arg2: memref<16x32xbf16, #tpu.memory_space<vmem>>, %arg3: memref<32x32xbf16, #tpu.memory_space<vmem>>, %arg4: memref<1x32xf32, #tpu.memory_space<vmem>>, %arg5: memref<1x32xf32, #tpu.memory_space<vmem>>, %arg6: memref<1x32xf32, #tpu.memory_space<vmem>>, %arg7: memref<32x128xbf16, #tpu.memory_space<vmem>>, %arg8: memref<1x128xf32, #tpu.memory_space<vmem>>, %arg9: memref<16x128xf32, #tpu.memory_space<vmem>>, %arg10: memref<16x32xbf16, #tpu.memory_space<vmem>>) attributes {dimension_semantics = [#tpu.dimension_semantics<parallel>, #tpu.dimension_semantics<arbitrary>], iteration_bounds = array<i64: 1, 1>, scalar_prefetch = 0 : i64, scratch_operands = 1 : i64, tpu.core_type = #tpu.core_type<tc>, window_params = [{transform_indices = @transform_0, window_bounds = array<i64: 16, 32>}, {pipeline_mode = #tpu.pipeline_mode<synchronous>, transform_indices = @transform_1, window_bounds = array<i64: 32, 32>}, {pipeline_mode = #tpu.pipeline_mode<synchronous>, transform_indices = @transform_2, window_bounds = array<i64: 1, 32>}, {pipeline_mode = #tpu.pipeline_mode<synchronous>, transform_indices = @transform_3, window_bounds = array<i64: 1, 32>}, {pipeline_mode = #tpu.pipeline_mode<synchronous>, transform_indices = @transform_4, window_bounds = array<i64: 1, 32>}, {transform_indices = @transform_5, window_bounds = array<i64: 32, 128>}, {transform_indices = @transform_6, window_bounds = array<i64: 1, 128>}, {transform_indices = @transform_7, window_bounds = array<i64: 16, 128>}]} {
    %c0_i32 = arith.constant 0 : i32
    %0 = arith.cmpi eq, %arg1, %c0_i32 : i32
    %1 = arith.extui %0 : i1 to i32
    %c0_i32_0 = arith.constant 0 : i32
    %2 = arith.cmpi ne, %1, %c0_i32_0 : i32
    scf.if %2 {
      %c0_8 = arith.constant 0 : index
      %c0_9 = arith.constant 0 : index
      %10 = vector.load %arg2[%c0_8, %c0_9] : memref<16x32xbf16, #tpu.memory_space<vmem>>, vector<16x32xbf16>
      %c0_10 = arith.constant 0 : index
      %c0_11 = arith.constant 0 : index
      %11 = vector.load %arg3[%c0_10, %c0_11] : memref<32x32xbf16, #tpu.memory_space<vmem>>, vector<32x32xbf16>
      %cst_12 = arith.constant dense<0.000000e+00> : vector<16x32xf32>
      %12 = tpu.matmul %10, %11, %cst_12 {dimension_numbers = #tpu.dot_dimension_numbers<[1], [0], [0], [1], [0, 0, 1, 1], [], []>} : vector<16x32xbf16>, vector<32x32xbf16>, vector<16x32xf32> -> vector<16x32xf32>
      %c0_13 = arith.constant 0 : index
      %c0_14 = arith.constant 0 : index
      %13 = vector.load %arg4[%c0_13, %c0_14] : memref<1x32xf32, #tpu.memory_space<vmem>>, vector<1x32xf32>
      %14 = vector.broadcast %13 : vector<1x32xf32> to vector<16x32xf32>
      %15 = arith.addf %12, %14 : vector<16x32xf32>
      %cst_15 = arith.constant 0.000000e+00 : f32
      %16 = vector.broadcast %cst_15 : f32 to vector<16x32xf32>
      %17 = arith.maximumf %15, %16 : vector<16x32xf32>
      %cst_16 = arith.constant dense<0.000000e+00> : vector<16xf32>
      %18 = vector.multi_reduction <add>, %17, %cst_16 [1] : vector<16x32xf32> to vector<16xf32>
      %19 = vector.shape_cast %18 : vector<16xf32> to vector<16x1xf32>
      %cst_17 = arith.constant 3.200000e+01 : f32
      %20 = vector.broadcast %cst_17 : f32 to vector<16x1xf32>
      %21 = arith.divf %19, %20 : vector<16x1xf32>
      %22 = vector.broadcast %21 : vector<16x1xf32> to vector<16x32xf32>
      %23 = arith.subf %17, %22 : vector<16x32xf32>
      %24 = vector.broadcast %21 : vector<16x1xf32> to vector<16x32xf32>
      %25 = arith.subf %17, %24 : vector<16x32xf32>
      %26 = arith.mulf %23, %25 : vector<16x32xf32>
      %cst_18 = arith.constant dense<0.000000e+00> : vector<16xf32>
      %27 = vector.multi_reduction <add>, %26, %cst_18 [1] : vector<16x32xf32> to vector<16xf32>
      %28 = vector.shape_cast %27 : vector<16xf32> to vector<16x1xf32>
      %cst_19 = arith.constant 3.200000e+01 : f32
      %29 = vector.broadcast %cst_19 : f32 to vector<16x1xf32>
      %30 = arith.divf %28, %29 : vector<16x1xf32>
      %31 = vector.broadcast %21 : vector<16x1xf32> to vector<16x32xf32>
      %32 = arith.subf %17, %31 : vector<16x32xf32>
      %cst_20 = arith.constant 9.99999974E-6 : f32
      %33 = vector.broadcast %cst_20 : f32 to vector<16x1xf32>
      %34 = arith.addf %30, %33 : vector<16x1xf32>
      %35 = math.rsqrt %34 : vector<16x1xf32>
      %36 = vector.broadcast %35 : vector<16x1xf32> to vector<16x32xf32>
      %37 = arith.mulf %32, %36 : vector<16x32xf32>
      %c0_21 = arith.constant 0 : index
      %c0_22 = arith.constant 0 : index
      %38 = vector.load %arg5[%c0_21, %c0_22] : memref<1x32xf32, #tpu.memory_space<vmem>>, vector<1x32xf32>
      %39 = vector.broadcast %38 : vector<1x32xf32> to vector<16x32xf32>
      %40 = arith.mulf %37, %39 : vector<16x32xf32>
      %c0_23 = arith.constant 0 : index
      %c0_24 = arith.constant 0 : index
      %41 = vector.load %arg6[%c0_23, %c0_24] : memref<1x32xf32, #tpu.memory_space<vmem>>, vector<1x32xf32>
      %42 = vector.broadcast %41 : vector<1x32xf32> to vector<16x32xf32>
      %43 = arith.addf %40, %42 : vector<16x32xf32>
      %44 = arith.truncf %43 : vector<16x32xf32> to vector<16x32xbf16>
      %c0_25 = arith.constant 0 : index
      %c0_26 = arith.constant 0 : index
      %45 = vector.load %arg10[%c0_25, %c0_26] : memref<16x32xbf16, #tpu.memory_space<vmem>>, vector<16x32xbf16>
      tpu.vector_store %arg10[%c0_25, %c0_26], %44 {strides = array<i32>} : memref<16x32xbf16, #tpu.memory_space<vmem>>, vector<16x32xbf16>,
    } else {
    }
    %c0 = arith.constant 0 : index
    %c0_1 = arith.constant 0 : index
    %3 = vector.load %arg10[%c0, %c0_1] : memref<16x32xbf16, #tpu.memory_space<vmem>>, vector<16x32xbf16>
    %c0_2 = arith.constant 0 : index
    %c0_3 = arith.constant 0 : index
    %4 = vector.load %arg7[%c0_2, %c0_3] : memref<32x128xbf16, #tpu.memory_space<vmem>>, vector<32x128xbf16>
    %cst = arith.constant dense<0.000000e+00> : vector<16x128xf32>
    %5 = tpu.matmul %3, %4, %cst {dimension_numbers = #tpu.dot_dimension_numbers<[1], [0], [0], [1], [0, 0, 1, 1], [], []>} : vector<16x32xbf16>, vector<32x128xbf16>, vector<16x128xf32> -> vector<16x128xf32>
    %c0_4 = arith.constant 0 : index
    %c0_5 = arith.constant 0 : index
    %6 = vector.load %arg8[%c0_4, %c0_5] : memref<1x128xf32, #tpu.memory_space<vmem>>, vector<1x128xf32>
    %7 = vector.broadcast %6 : vector<1x128xf32> to vector<16x128xf32>
    %8 = arith.addf %5, %7 : vector<16x128xf32>
    %c0_6 = arith.constant 0 : index
    %c0_7 = arith.constant 0 : index
    %9 = vector.load %arg9[%c0_6, %c0_7] : memref<16x128xf32, #tpu.memory_space<vmem>>, vector<16x128xf32>
    tpu.vector_store %arg9[%c0_6, %c0_7], %8 {strides = array<i32>} : memref<16x128xf32, #tpu.memory_space<vmem>>, vector<16x128xf32>,
    return
  }
  func.func @transform_0(%arg0: i32, %arg1: i32) -> (i32, i32) {
    %c0_i32 = arith.constant 0 : i32
    %c0_i32_0 = arith.constant 0 : i32
    return %arg0, %c0_i32 : i32, i32
  }
  func.func @transform_1(%arg0: i32, %arg1: i32) -> (i32, i32) {
    %c0_i32 = arith.constant 0 : i32
    %c0_i32_0 = arith.constant 0 : i32
    %c0_i32_1 = arith.constant 0 : i32
    return %c0_i32, %c0_i32_0 : i32, i32
  }
  func.func @transform_2(%arg0: i32, %arg1: i32) -> (i32, i32) {
    %c0_i32 = arith.constant 0 : i32
    %c0_i32_0 = arith.constant 0 : i32
    %c0_i32_1 = arith.constant 0 : i32
    return %c0_i32, %c0_i32_0 : i32, i32
  }
  func.func @transform_3(%arg0: i32, %arg1: i32) -> (i32, i32) {
    %c0_i32 = arith.constant 0 : i32
    %c0_i32_0 = arith.constant 0 : i32
    %c0_i32_1 = arith.constant 0 : i32
    return %c0_i32, %c0_i32_0 : i32, i32
  }
  func.func @transform_4(%arg0: i32, %arg1: i32) -> (i32, i32) {
    %c0_i32 = arith.constant 0 : i32
    %c0_i32_0 = arith.constant 0 : i32
    %c0_i32_1 = arith.constant 0 : i32
    return %c0_i32, %c0_i32_0 : i32, i32
  }
  func.func @transform_5(%arg0: i32, %arg1: i32) -> (i32, i32) {
    %c0_i32 = arith.constant 0 : i32
    %c0_i32_0 = arith.constant 0 : i32
    return %c0_i32, %arg1 : i32, i32
  }
  func.func @transform_6(%arg0: i32, %arg1: i32) -> (i32, i32) {
    %c0_i32 = arith.constant 0 : i32
    %c0_i32_0 = arith.constant 0 : i32
    return %c0_i32, %arg1 : i32, i32
  }
  func.func @transform_7(%arg0: i32, %arg1: i32) -> (i32, i32) {
    %c0_i32 = arith.constant 0 : i32
    return %arg0, %arg1 : i32, i32
  }
}

</mosaic_0001>

<llo_original>
// kernel: tpu_custom_call.1
$region0: #{tpu_custom_call.1}
  #allocation0 [shape = 'u32[]', space=smem, size = 0x4, offset = 0x4, fixed_abs, tag = 'smem constant byte address 0x4 - core index']
  #allocation1 [shape = 'u32[144,128]{1,0:T(1,128)}', space=vmem, size = 0x12000, scoped, tag = 'internal scratch']
  #allocation2 [shape = 'bf16[16,32]{1,0:T(16,128)(2,1)}', space=vmem, size = 0x1000, scoped, tag = 'scratch operand']
  %s0 = inlined_call_operand.hbm [shape: bf16[16,32], index: 0, kind: input, shape index: {}]
  %s1 = inlined_call_operand.hbm [shape: bf16[32,32], index: 1, kind: input, shape index: {}]
  %s2 = inlined_call_operand.vmem [shape: f32[1,32], index: 2, kind: input, shape index: {}]
  %s3 = inlined_call_operand.vmem [shape: f32[1,32], index: 3, kind: input, shape index: {}]
  %s4 = inlined_call_operand.hbm [shape: f32[1,32], index: 4, kind: input, shape index: {}]
  %s5 = inlined_call_operand.vmem [shape: bf16[32,128], index: 5, kind: input, shape index: {}]
  %s6 = inlined_call_operand.vmem [shape: f32[1,128], index: 6, kind: input, shape index: {}]
  %s7 = inlined_call_operand.hbm [shape: f32[16,128], index: 7, kind: output, shape index: {}]
  %s8 = sld [smem:[#allocation0]]
  $region54: #{tpu_custom_call.1} parent=0
    _
  %s10 = ssub.s32 1, %s8
  %s11 = scalar_select 0, %s10, %s8
  $region1: #{tpu_custom_call.1} parent=0
    #allocation3 [shape = 'u8[4096]{0}', space=vmem, size = 0x1000, scoped, tag = 'input window, operand 0, single buffered']
    #allocation4 [shape = 's32[1]{0}', space=sflag, size = 0x4, scoped, tag = 'scoped memory for tpu_custom_call.1']
    #allocation5 [shape = 's32[1]{0}', space=sflag, size = 0x4, scoped, tag = 'scoped memory for tpu_custom_call.1']
    #allocation6 [shape = 'u8[8192]{0}', space=vmem, size = 0x2000, scoped, tag = 'input window, operand 1, single buffered']
    #allocation7 [shape = 's32[1]{0}', space=sflag, size = 0x4, scoped, tag = 'scoped memory for tpu_custom_call.1']
    #allocation8 [shape = 'u8[512]{0}', space=vmem, size = 0x400, scoped, tag = 'input window, operand 4, single buffered']
    #allocation9 [shape = 'u8[8192]{0}', space=vmem, size = 0x2000, scoped, tag = 'output window, operand 0, single buffered']
    %12 = vsyncpa [#allocation4], 0
    %13 = vsyncpa [#allocation7], 0
    %14 = vsyncpa [#allocation5], 0
    // Predicated region
    $region2: #{tpu_custom_call.1} parent=1 // pred_check
      _
    $region3: #{tpu_custom_call.1} parent=1 // pred_check_branch
      %16 = sbr.rel (0) target = $region5
    $region4: #{tpu_custom_call.1} parent=1 // pred_region
      %s18 = ssub.s32 128, 128
      %19 = vsyncadd [#allocation4], %s18
      %s20 = sshll.u32 [#allocation3], 4
      %s21 = int_to_ptr.vmem [resolvable:$true] %s20
      %26 = dma.hbm_to_vmem [thread:$0]  %s0, 128, %s21, [#allocation4], 64, 64, 4
    $region5: #{tpu_custom_call.1} parent=1 // pred_fallthru
      _
    // Predicated region
    $region6: #{tpu_custom_call.1} parent=1 // pred_check
      _
    $region7: #{tpu_custom_call.1} parent=1 // pred_check_branch
      %28 = sbr.rel (0) target = $region9
    $region8: #{tpu_custom_call.1} parent=1 // pred_region
      %s30 = ssub.s32 256, 256
      %31 = vsyncadd [#allocation7], %s30
      %s32 = sshll.u32 [#allocation6], 4
      %s33 = int_to_ptr.vmem [resolvable:$true] %s32
      %38 = dma.hbm_to_vmem [thread:$0]  %s1, 256, %s33, [#allocation7], 64, 64, 4
    $region9: #{tpu_custom_call.1} parent=1 // pred_fallthru
      _
    // Predicated region
    $region10: #{tpu_custom_call.1} parent=1 // pred_check
      _
    $region11: #{tpu_custom_call.1} parent=1 // pred_check_branch
      %40 = sbr.rel (0) target = $region13
    $region12: #{tpu_custom_call.1} parent=1 // pred_region
      _
    $region13: #{tpu_custom_call.1} parent=1 // pred_fallthru
      _
    // Predicated region
    $region14: #{tpu_custom_call.1} parent=1 // pred_check
      _
    $region15: #{tpu_custom_call.1} parent=1 // pred_check_branch
      %42 = sbr.rel (0) target = $region17
    $region16: #{tpu_custom_call.1} parent=1 // pred_region
      _
    $region17: #{tpu_custom_call.1} parent=1 // pred_fallthru
      _
    // Predicated region
    $region18: #{tpu_custom_call.1} parent=1 // pred_check
      _
    $region19: #{tpu_custom_call.1} parent=1 // pred_check_branch
      %44 = sbr.rel (0) target = $region21
    $region20: #{tpu_custom_call.1} parent=1 // pred_region
      %s46 = ssub.s32 16, 16
      %47 = vsyncadd [#allocation7], %s46
      %s49 = sshll.u32 [#allocation8], 4
      %s50 = int_to_ptr.vmem [resolvable:$true] %s49
      %52 = dma.hbm_to_vmem [thread:$0]  %s4, 16, %s50, [#allocation7]
    $region21: #{tpu_custom_call.1} parent=1 // pred_fallthru
      _
    // Predicated region
    $region22: #{tpu_custom_call.1} parent=1 // pred_check
      _
    $region23: #{tpu_custom_call.1} parent=1 // pred_check_branch
      %54 = sbr.rel (0) target = $region25
    $region24: #{tpu_custom_call.1} parent=1 // pred_region
      _
    $region25: #{tpu_custom_call.1} parent=1 // pred_fallthru
      _
    // Predicated region
    $region26: #{tpu_custom_call.1} parent=1 // pred_check
      _
    $region27: #{tpu_custom_call.1} parent=1 // pred_check_branch
      %56 = sbr.rel (0) target = $region29
    $region28: #{tpu_custom_call.1} parent=1 // pred_region
      _
    $region29: #{tpu_custom_call.1} parent=1 // pred_fallthru
      _
    // Predicated region
    $region30: #{tpu_custom_call.1} parent=1 // pred_check
      _
    $region31: #{tpu_custom_call.1} parent=1 // pred_check_branch
      %58 = sbr.rel (0) target = $region33
    $region32: #{tpu_custom_call.1} parent=1 // pred_region
      %59 = dma.done [#allocation4], 128
    $region33: #{tpu_custom_call.1} parent=1 // pred_fallthru
      _
    // Predicated region
    $region34: #{tpu_custom_call.1} parent=1 // pred_check
      _
    $region35: #{tpu_custom_call.1} parent=1 // pred_check_branch
      %61 = sbr.rel (0) target = $region37
    $region36: #{tpu_custom_call.1} parent=1 // pred_region
      %62 = dma.done [#allocation7], 256
    $region37: #{tpu_custom_call.1} parent=1 // pred_fallthru
      _
    // Predicated region
    $region38: #{tpu_custom_call.1} parent=1 // pred_check
      _
    $region39: #{tpu_custom_call.1} parent=1 // pred_check_branch
      %64 = sbr.rel (0) target = $region41
    $region40: #{tpu_custom_call.1} parent=1 // pred_region
      %65 = dma.done [#allocation7], 16
    $region41: #{tpu_custom_call.1} parent=1 // pred_fallthru
      _
    %p67 = scmp.eq.s32.totalorder 0, 0
    // Predicated region
    $region42: #{tpu_custom_call.1} parent=1 // pred_check
      %p68 = pneg %p67
    $region43: #{tpu_custom_call.1} parent=1 // pred_check_branch
      %70 = sbr.rel (%p68) target = $region45
    $region44: #{tpu_custom_call.1} parent=1 // pred_region
      %v71 = vld [vmem:[#allocation3] sm:$0xf]
      %v72 = vld [vmem:[#allocation3 + $0x4] sm:$0xf]
      %v73 = vld [vmem:[#allocation6] sm:$0xf]
      %v74 = vld [vmem:[#allocation6 + $0x4] sm:$0xf]
      %v75 = vld [vmem:[#allocation6 + $0x8] sm:$0xf]
      %v76 = vld [vmem:[#allocation6 + $0xc] sm:$0xf]
      %v77 = vld [vmem:[%s2] sm:$0x1]
      %v79 = vlaneseq
      %v80 = vshrl.u32 %v79, 7
      %v81 = vsub.s32 0, %v80
      %v82 = vrot.slane %v77, %v81
      %v86 = vunpack.c.l.b16 %v71
      %v87 = vunpack.c.l.b16 %v72
      %v88 = vpack.c.b16 %v87, %v86
      %v93 = vunpack.c.l.b16 %v73
      %v94 = vunpack.c.l.b16 %v74
      %v95 = vunpack.c.l.b16 %v75
      %v96 = vunpack.c.l.b16 %v76
      %v97 = vpack.c.b16 %v94, %v93
      %v98 = vpack.c.b16 %v96, %v95
      %vm101 = vcmask 261120
      %v103 = vsel %vm101, %v88, 0
      %105 = vmatprep.subr.bf16.mxu0 0
      %106 = vmatpush1.bf16.msra.mxu0 %v97
      %107 = vmatprep.subr.bf16.mxu0 0
      %108 = vmatpush1.bf16.msra.mxu0 %v98
      %109 = vmatprep.subr.bf16.mxu0 0
      %110 = vmatpush1.bf16.msra.mxu0 0
      %111 = vmatprep.subr.bf16.mxu0 0
      %112 = vmatpush1.bf16.msra.mxu0 0
      %113 = vmatprep.subr.bf16.mxu0 0
      %114 = vmatpush1.bf16.msra.mxu0 0
      %115 = vmatprep.subr.bf16.mxu0 0
      %116 = vmatpush1.bf16.msra.mxu0 0
      %117 = vmatprep.subr.bf16.mxu0 0
      %118 = vmatpush1.bf16.msra.mxu0 0
      %119 = vmatprep.subr.bf16.mxu0 0
      %120 = vmatpush1.bf16.msra.mxu0 0
      %121 = vmatprep.subr.bf16.mxu0 0
      %122 = vmatpush1.bf16.msra.mxu0 0
      %123 = vmatprep.subr.bf16.mxu0 0
      %124 = vmatpush1.bf16.msra.mxu0 0
      %125 = vmatprep.subr.bf16.mxu0 0
      %126 = vmatpush1.bf16.msra.mxu0 0
      %127 = vmatprep.subr.bf16.mxu0 0
      %128 = vmatpush1.bf16.msra.mxu0 0
      %129 = vmatprep.subr.bf16.mxu0 0
      %130 = vmatpush1.bf16.msra.mxu0 0
      %131 = vmatprep.subr.bf16.mxu0 0
      %132 = vmatpush1.bf16.msra.mxu0 0
      %133 = vmatprep.subr.bf16.mxu0 0
      %134 = vmatpush1.bf16.msra.mxu0 0
      %135 = vmatprep.subr.bf16.mxu0 0
      %136 = vmatpush1.bf16.msra.mxu0 0
      %137 = vmatprep.mubr.bf16.mxu0 0
      %138 = vmatmul.mubr.bf16.gmra.mrb[0].mxu0 %v103
      %v139 = vpop.f32.mrb[0].mxu0
      %v140 = vadd.f32 %v82, %v139
      %v141 = vpop.f32.mrb[0].mxu0
      %v142 = vpop.f32.mrb[0].mxu0
      %v143 = vadd.f32 %v82, %v142
      %v144 = vpop.f32.mrb[0].mxu0
      %145 = vdwg.mxu0
      %v146 = vmax.f32 %v140, 0.0
      %v147 = vmax.f32 %v143, 0.0
      %v148 = vsel %vm101, %v146, 0.0
      %149 = vadd.xlane.f32.xlu0 %v148
      %v150 = vpop.xlane.xlu0 %149
      %v151 = vsel %vm101, %v147, 0.0
      %152 = vadd.xlane.f32.xlu0 %v151
      %v153 = vpop.xlane.xlu0 %152
      %v154 = vrcp.pop 32.0
      %v155 = vmul.f32 %v150, %v154
      %v156 = vmul.f32 %v153, %v154
      %v157 = vsub.f32 %v146, %v155
      %v158 = vsub.f32 %v147, %v156
      %v159 = vmul.f32 %v157, %v157
      %v160 = vmul.f32 %v158, %v158
      %v161 = vsel %vm101, %v159, 0.0
      %162 = vadd.xlane.f32.xlu0 %v161
      %v163 = vpop.xlane.xlu0 %162
      %v164 = vsel %vm101, %v160, 0.0
      %165 = vadd.xlane.f32.xlu0 %v164
      %v166 = vpop.xlane.xlu0 %165
      %v167 = vmul.f32 %v163, %v154
      %v168 = vmul.f32 %v166, %v154
      %v169 = vadd.f32 %v167, 1e-05
      %v170 = vadd.f32 %v168, 1e-05
      %v171 = vrsqrt.pop %v169
      %v172 = vrsqrt.pop %v170
      %v173 = vmul.f32 %v157, %v171
      %v174 = vmul.f32 %v158, %v172
      %v175 = vld [vmem:[%s3] sm:$0x1]
      %v177 = vlaneseq
      %v178 = vshrl.u32 %v177, 7
      %v179 = vsub.s32 0, %v178
      %v180 = vrot.slane %v175, %v179
      %v182 = vmul.f32 %v173, %v180
      %v183 = vmul.f32 %v174, %v180
      %v184 = vld [vmem:[#allocation8] sm:$0x1]
      %v186 = vlaneseq
      %v187 = vshrl.u32 %v186, 7
      %v188 = vsub.s32 0, %v187
      %v189 = vrot.slane %v184, %v188
      %v191 = vadd.f32 %v182, %v189
      %v192 = vadd.f32 %v183, %v189
      %v193 = vpack.c.bf16 %v192, %v191
      %194 = vst.msk [vmem:[#allocation2] sm:$0xff] %vm101, %v193
    $region45: #{tpu_custom_call.1} parent=1 // pred_fallthru
      _
    %v195 = vld [vmem:[#allocation2] sm:$0xff]
    %v196 = vld [vmem:[%s5] sm:$0xf]
    %v197 = vld [vmem:[%s5 + $0x4] sm:$0xf]
    %v198 = vld [vmem:[%s5 + $0x8] sm:$0xf]
    %v199 = vld [vmem:[%s5 + $0xc] sm:$0xf]
    %v200 = vld [vmem:[%s6] sm:$0x1]
    %v202 = vlaneseq
    %v203 = vshrl.u32 %v202, 7
    %v204 = vsub.s32 0, %v203
    %v205 = vrot.slane %v200, %v204
    %v211 = vunpack.c.l.b16 %v196
    %v212 = vunpack.c.l.b16 %v197
    %v213 = vunpack.c.l.b16 %v198
    %v214 = vunpack.c.l.b16 %v199
    %v215 = vpack.c.b16 %v212, %v211
    %v216 = vpack.c.b16 %v214, %v213
    %vm219 = vcmask 261120
    %v221 = vsel %vm219, %v195, 0
    %223 = vmatprep.subr.bf16.mxu0 0
    %224 = vmatpush1.bf16.msra.mxu0 %v215
    %225 = vmatprep.subr.bf16.mxu0 0
    %226 = vmatpush1.bf16.msra.mxu0 %v216
    %227 = vmatprep.subr.bf16.mxu0 0
    %228 = vmatpush1.bf16.msra.mxu0 0
    %229 = vmatprep.subr.bf16.mxu0 0
    %230 = vmatpush1.bf16.msra.mxu0 0
    %231 = vmatprep.subr.bf16.mxu0 0
    %232 = vmatpush1.bf16.msra.mxu0 0
    %233 = vmatprep.subr.bf16.mxu0 0
    %234 = vmatpush1.bf16.msra.mxu0 0
    %235 = vmatprep.subr.bf16.mxu0 0
    %236 = vmatpush1.bf16.msra.mxu0 0
    %237 = vmatprep.subr.bf16.mxu0 0
    %238 = vmatpush1.bf16.msra.mxu0 0
    %239 = vmatprep.subr.bf16.mxu0 0
    %240 = vmatpush1.bf16.msra.mxu0 0
    %241 = vmatprep.subr.bf16.mxu0 0
    %242 = vmatpush1.bf16.msra.mxu0 0
    %243 = vmatprep.subr.bf16.mxu0 0
    %244 = vmatpush1.bf16.msra.mxu0 0
    %245 = vmatprep.subr.bf16.mxu0 0
    %246 = vmatpush1.bf16.msra.mxu0 0
    %247 = vmatprep.subr.bf16.mxu0 0
    %248 = vmatpush1.bf16.msra.mxu0 0
    %249 = vmatprep.subr.bf16.mxu0 0
    %250 = vmatpush1.bf16.msra.mxu0 0
    %251 = vmatprep.subr.bf16.mxu0 0
    %252 = vmatpush1.bf16.msra.mxu0 0
    %253 = vmatprep.subr.bf16.mxu0 0
    %254 = vmatpush1.bf16.msra.mxu0 0
    %255 = vmatprep.mubr.bf16.mxu0 0
    %256 = vmatmul.mubr.bf16.gmra.mrb[0].mxu0 %v221
    %v257 = vpop.f32.mrb[0].mxu0
    %v258 = vadd.f32 %v205, %v257
    %v259 = vpop.f32.mrb[0].mxu0
    %v260 = vpop.f32.mrb[0].mxu0
    %v261 = vadd.f32 %v205, %v260
    %v262 = vpop.f32.mrb[0].mxu0
    %263 = vdwg.mxu0
    %264 = vst [vmem:[#allocation9] sm:$0xff] %v258
    %265 = vst [vmem:[#allocation9 + $0x8] sm:$0xff] %v261
    // Predicated region
    $region46: #{tpu_custom_call.1} parent=1 // pred_check
      _
    $region47: #{tpu_custom_call.1} parent=1 // pred_check_branch
      %267 = sbr.rel (0) target = $region49
    $region48: #{tpu_custom_call.1} parent=1 // pred_region
      %s269 = ssub.s32 256, 256
      %270 = vsyncadd [#allocation5], %s269
      %s271 = sshll.u32 [#allocation9], 4
      %s272 = int_to_ptr.vmem [resolvable:$true] %s271
      %277 = dma.vmem_to_hbm [thread:$0]  %s272, 256, %s7, [#allocation5], 128, 128, 8
    $region49: #{tpu_custom_call.1} parent=1 // pred_fallthru
      _
    // Predicated region
    $region50: #{tpu_custom_call.1} parent=1 // pred_check
      _
    $region51: #{tpu_custom_call.1} parent=1 // pred_check_branch
      %279 = sbr.rel (0) target = $region53
    $region52: #{tpu_custom_call.1} parent=1 // pred_region
      %280 = dma.done [#allocation5], 256
    $region53: #{tpu_custom_call.1} parent=1 // pred_fallthru
      _
    %281 = vsyncpa [#allocation4], 1
    %282 = vsyncpa [#allocation7], 1
    %283 = vsyncpa [#allocation5], 1

</llo_original>
